<compile_context>
chip_gen: v7x
topology: tpu7x:2x2x1
jax: 0.10.0
libtpu: 0.0.40
codegen_flags: <defaults>
</compile_context>

<pallas_src>
import jax
import jax.numpy as jnp
from jax.experimental import pallas as pl
from jax.experimental.pallas import tpu as pltpu


def _round_up(x, m):
    return ((x + m - 1) // m) * m


def _cdiv(a, b):
    return (a + b - 1) // b


def _ptw_kernel(x_ref, w1_ref, b1_ref, w2_ref, b2_ref, out_ref):
    # x_ref:  (TN, D)  f32     w1_ref: (D, H)  bf16    b1_ref: (1, H)  f32
    # w2_ref: (H, Cp)  f32     b2_ref: (1, Cp) f32     out_ref: (TN, Cp) bf16/f32
    # In-kernel bf16 cast of x (wrapper never does an extra HBM pass for this).
    x_bf = x_ref[...].astype(jnp.bfloat16)

    # calc_hidden_feature: Linear + tanh (f32 accumulation on the MXU).
    h = jnp.tanh(
        jnp.dot(x_bf, w1_ref[...], preferred_element_type=jnp.float32)
        + b1_ref[...]
    )

    # predict_log_probs_with_hidden_feature: Linear + log_softmax.
    # h kept in f32 for the second dot (compute negligible, preserves precision).
    logits = (
        jnp.dot(h, w2_ref[...], preferred_element_type=jnp.float32)
        + b2_ref[...]
    )
    # Padded classes carry a -1e30 bias -> never the max; exp underflows to 0,
    # so the normalizer only covers the real classes.
    m = jnp.max(logits, axis=-1, keepdims=True)
    lse = jnp.log(jnp.sum(jnp.exp(logits - m), axis=-1, keepdims=True)) + m
    out_ref[...] = (logits - lse).astype(out_ref.dtype)


def prepare_phone_type_writer_params(w1, b1, w2, b2):
    """One-time (model-load) parameter prep, hoisted out of the per-call path.

    w1:[D,H]  b1:[1,H]  w2:[H,C]  b2:[1,C]  (float32, [in, out] layout).
    Pads the class axis to a lane-dense multiple of 128 (zero weight columns,
    -1e30 bias entries) and casts W1 to bf16 for the MXU.
    """
    C = w2.shape[1]
    Cp = _round_up(C, 128)
    return {
        "w1": w1.astype(jnp.bfloat16),
        "b1": b1.astype(jnp.float32),
        "w2": jnp.pad(w2, ((0, 0), (0, Cp - C))).astype(jnp.float32),
        "b2": jnp.pad(b2, ((0, 0), (0, Cp - C)),
                      constant_values=-1e30).astype(jnp.float32),
    }


def _choose_tile(n, tile_n):
    """Frame-tile size.

    Small n: a single sublane-packed block (bf16 packs 16 sublanes -> round to 16).
    Larger n: an even number (>=2) of roughly equal steps so the "parallel"
    frame axis splits evenly across v7x's two TensorCores, each step <= ~tile_n.
    """
    if n <= 256:
        return max(_round_up(n, 16), 16)
    steps = 2 * _cdiv(n, 2 * tile_n)
    return _round_up(_cdiv(n, steps), 16)


def phone_type_writer_forward(x, params, *, tile_n=2048, out_dtype=jnp.bfloat16):
    """x: [N, D] float32 frames (flattened PackedSequence data).

    Returns [N, Cp] `out_dtype` log-probs with Cp = round_up(n_phones, 128).
    Columns >= n_phones are padding (~-1e30); the consumer gathers/ignores them
    (returning the lane-dense padded block avoids a full extra HBM slice pass).
    """
    N, D = x.shape
    w1, b1, w2, b2 = params["w1"], params["b1"], params["w2"], params["b2"]
    H = w1.shape[1]
    Cp = w2.shape[1]

    if N == 0:  # degenerate-input guard
        return jnp.zeros((0, Cp), out_dtype)

    tile = _choose_tile(N, tile_n)
    grid = (_cdiv(N, tile),)
    # No row padding of x: Pallas pads boundary-block reads and masks the
    # corresponding out-of-range output writes for a ragged final tile.

    out_bytes = jnp.dtype(out_dtype).itemsize
    est_vmem = (
        2 * tile * D * 4                  # x tile (f32, double-buffered)
        + 2 * tile * Cp * out_bytes       # out tile (double-buffered)
        + 2 * (D * H * 2 + H * Cp * 4)    # resident weights (worst case 2 bufs)
        + 2 * (H + Cp) * 4                # biases
    )
    vmem_limit = None
    if est_vmem > 12 * 1024 * 1024:       # only bump past the v5e 16 MiB default
        vmem_limit = min(2 * est_vmem, 100 * 1024 * 1024)

    return pl.pallas_call(
        _ptw_kernel,
        out_shape=jax.ShapeDtypeStruct((N, Cp), out_dtype),
        grid_spec=pltpu.PrefetchScalarGridSpec(
            num_scalar_prefetch=0,
            grid=grid,
            in_specs=[
                pl.BlockSpec((tile, D), lambda i: (i, 0)),  # frame tile (f32)
                pl.BlockSpec((D, H), lambda i: (0, 0)),     # W1 (bf16, resident)
                pl.BlockSpec((1, H), lambda i: (0, 0)),     # b1
                pl.BlockSpec((H, Cp), lambda i: (0, 0)),    # W2 (f32, padded)
                pl.BlockSpec((1, Cp), lambda i: (0, 0)),    # b2 (padded, -1e30)
            ],
            out_specs=pl.BlockSpec((tile, Cp), lambda i: (i, 0)),
        ),
        compiler_params=pltpu.CompilerParams(
            dimension_semantics=("parallel",),
            vmem_limit_bytes=vmem_limit,
        ),
    )(x, w1, b1, w2, b2)


def _reference(x, w1, b1, w2, b2):
    h = jnp.tanh(x @ w1 + b1)
    logits = h @ w2 + b2
    return jax.nn.log_softmax(logits, axis=-1)


if __name__ == "__main__":
    # Small shapes consistent with the module's forward:
    #   batch=2, seq=8 frames each, feat_dim=32, hidden_feature_dim=64,
    #   n_phones=40 (typical Japanese phone inventory size).
    batch, seq, feat_dim, hidden_dim, n_phones = 2, 8, 32, 64, 40

    key = jax.random.PRNGKey(0)
    k_x, k_w1, k_b1, k_w2, k_b2 = jax.random.split(key, 5)

    w1 = jax.random.normal(k_w1, (feat_dim, hidden_dim), jnp.float32) * 0.1
    b1 = jax.random.normal(k_b1, (1, hidden_dim), jnp.float32) * 0.01
    w2 = jax.random.normal(k_w2, (hidden_dim, n_phones), jnp.float32) * 0.1
    b2 = jax.random.normal(k_b2, (1, n_phones), jnp.float32) * 0.01

    # PackedSequence data: all sequences full length here, so the packed frame
    # tensor is the flattened [batch*seq, feat_dim] array.
    # TODO(synk): ragged (variable-length) PackedSequence batching and the
    # reset_context/detach_context recurrent hooks are handled outside the
    # kernel; only valid frames are passed in.
    feat = jax.random.normal(k_x, (batch, seq, feat_dim), jnp.float32)
    frames = feat.reshape(batch * seq, feat_dim)

    # One-time weight prep (model-load path, not per call).
    params = prepare_phone_type_writer_params(w1, b1, w2, b2)

    fwd = jax.jit(phone_type_writer_forward)
    log_probs_padded = jax.block_until_ready(fwd(frames, params))

    Cp = params["w2"].shape[1]
    assert log_probs_padded.shape == (batch * seq, Cp)
    assert log_probs_padded.dtype == jnp.bfloat16

    # Test-only: gather the valid classes (a real consumer would fuse this /
    # index directly into the padded block) and compare with a pure-JAX ref.
    log_probs = log_probs_padded[:, :n_phones].astype(jnp.float32)
    ref = _reference(frames, w1, b1, w2, b2)
    assert jnp.allclose(log_probs, ref, atol=5e-2, rtol=5e-2), "mismatch vs reference"
    # Sanity: rows are valid log-prob distributions (loose tol: bf16 output).
    assert jnp.allclose(jnp.sum(jnp.exp(log_probs), axis=-1), 1.0, atol=2e-2)

    print("KERNEL_OK")
</pallas_src>

<mosaic_0001>
module attributes {stable_mosaic.version = 11 : i64} {
  func.func @_ptw_kernel(%arg0: i32, %arg1: memref<16x32xf32, #tpu.memory_space<vmem>>, %arg2: memref<32x64xbf16, #tpu.memory_space<vmem>>, %arg3: memref<1x64xf32, #tpu.memory_space<vmem>>, %arg4: memref<64x128xf32, #tpu.memory_space<vmem>>, %arg5: memref<1x128xf32, #tpu.memory_space<vmem>>, %arg6: memref<16x128xbf16, #tpu.memory_space<vmem>>) attributes {dimension_semantics = [#tpu.dimension_semantics<parallel>], iteration_bounds = array<i64: 1>, scalar_prefetch = 0 : i64, scratch_operands = 0 : i64, tpu.core_type = #tpu.core_type<tc>, window_params = [{transform_indices = @transform_0, window_bounds = array<i64: 16, 32>}, {pipeline_mode = #tpu.pipeline_mode<synchronous>, transform_indices = @transform_1, window_bounds = array<i64: 32, 64>}, {pipeline_mode = #tpu.pipeline_mode<synchronous>, transform_indices = @transform_2, window_bounds = array<i64: 1, 64>}, {pipeline_mode = #tpu.pipeline_mode<synchronous>, transform_indices = @transform_3, window_bounds = array<i64: 64, 128>}, {pipeline_mode = #tpu.pipeline_mode<synchronous>, transform_indices = @transform_4, window_bounds = array<i64: 1, 128>}, {transform_indices = @transform_5, window_bounds = array<i64: 16, 128>}]} {
    %c0 = arith.constant 0 : index
    %c0_0 = arith.constant 0 : index
    %0 = vector.load %arg1[%c0, %c0_0] : memref<16x32xf32, #tpu.memory_space<vmem>>, vector<16x32xf32>
    %1 = arith.truncf %0 : vector<16x32xf32> to vector<16x32xbf16>
    %c0_1 = arith.constant 0 : index
    %c0_2 = arith.constant 0 : index
    %2 = vector.load %arg2[%c0_1, %c0_2] : memref<32x64xbf16, #tpu.memory_space<vmem>>, vector<32x64xbf16>
    %cst = arith.constant dense<0.000000e+00> : vector<16x64xf32>
    %3 = tpu.matmul %1, %2, %cst {dimension_numbers = #tpu.dot_dimension_numbers<[1], [0], [0], [1], [0, 0, 1, 1], [], []>} : vector<16x32xbf16>, vector<32x64xbf16>, vector<16x64xf32> -> vector<16x64xf32>
    %c0_3 = arith.constant 0 : index
    %c0_4 = arith.constant 0 : index
    %4 = vector.load %arg3[%c0_3, %c0_4] : memref<1x64xf32, #tpu.memory_space<vmem>>, vector<1x64xf32>
    %5 = vector.broadcast %4 : vector<1x64xf32> to vector<16x64xf32>
    %6 = arith.addf %3, %5 : vector<16x64xf32>
    %7 = math.tanh %6 : vector<16x64xf32>
    %c0_5 = arith.constant 0 : index
    %c0_6 = arith.constant 0 : index
    %8 = vector.load %arg4[%c0_5, %c0_6] : memref<64x128xf32, #tpu.memory_space<vmem>>, vector<64x128xf32>
    %cst_7 = arith.constant dense<0.000000e+00> : vector<16x128xf32>
    %9 = tpu.matmul %7, %8, %cst_7 {dimension_numbers = #tpu.dot_dimension_numbers<[1], [0], [0], [1], [0, 0, 1, 1], [], []>} : vector<16x64xf32>, vector<64x128xf32>, vector<16x128xf32> -> vector<16x128xf32>
    %c0_8 = arith.constant 0 : index
    %c0_9 = arith.constant 0 : index
    %10 = vector.load %arg5[%c0_8, %c0_9] : memref<1x128xf32, #tpu.memory_space<vmem>>, vector<1x128xf32>
    %11 = vector.broadcast %10 : vector<1x128xf32> to vector<16x128xf32>
    %12 = arith.addf %9, %11 : vector<16x128xf32>
    %cst_10 = arith.constant dense<0xFF800000> : vector<16xf32>
    %13 = vector.multi_reduction <maximumf>, %12, %cst_10 [1] : vector<16x128xf32> to vector<16xf32>
    %14 = vector.shape_cast %13 : vector<16xf32> to vector<16x1xf32>
    %15 = vector.broadcast %14 : vector<16x1xf32> to vector<16x128xf32>
    %16 = arith.subf %12, %15 : vector<16x128xf32>
    %17 = math.exp %16 : vector<16x128xf32>
    %cst_11 = arith.constant dense<0.000000e+00> : vector<16xf32>
    %18 = vector.multi_reduction <add>, %17, %cst_11 [1] : vector<16x128xf32> to vector<16xf32>
    %19 = vector.shape_cast %18 : vector<16xf32> to vector<16x1xf32>
    %20 = math.log %19 : vector<16x1xf32>
    %21 = arith.addf %20, %14 : vector<16x1xf32>
    %22 = vector.broadcast %21 : vector<16x1xf32> to vector<16x128xf32>
    %23 = arith.subf %12, %22 : vector<16x128xf32>
    %24 = arith.truncf %23 : vector<16x128xf32> to vector<16x128xbf16>
    %c0_12 = arith.constant 0 : index
    %c0_13 = arith.constant 0 : index
    %25 = vector.load %arg6[%c0_12, %c0_13] : memref<16x128xbf16, #tpu.memory_space<vmem>>, vector<16x128xbf16>
    tpu.vector_store %arg6[%c0_12, %c0_13], %24 {strides = array<i32>} : memref<16x128xbf16, #tpu.memory_space<vmem>>, vector<16x128xbf16>,
    return
  }
  func.func @transform_0(%arg0: i32) -> (i32, i32) {
    %c0_i32 = arith.constant 0 : i32
    %c0_i32_0 = arith.constant 0 : i32
    return %arg0, %c0_i32 : i32, i32
  }
  func.func @transform_1(%arg0: i32) -> (i32, i32) {
    %c0_i32 = arith.constant 0 : i32
    %c0_i32_0 = arith.constant 0 : i32
    %c0_i32_1 = arith.constant 0 : i32
    return %c0_i32, %c0_i32_0 : i32, i32
  }
  func.func @transform_2(%arg0: i32) -> (i32, i32) {
    %c0_i32 = arith.constant 0 : i32
    %c0_i32_0 = arith.constant 0 : i32
    %c0_i32_1 = arith.constant 0 : i32
    return %c0_i32, %c0_i32_0 : i32, i32
  }
  func.func @transform_3(%arg0: i32) -> (i32, i32) {
    %c0_i32 = arith.constant 0 : i32
    %c0_i32_0 = arith.constant 0 : i32
    %c0_i32_1 = arith.constant 0 : i32
    return %c0_i32, %c0_i32_0 : i32, i32
  }
  func.func @transform_4(%arg0: i32) -> (i32, i32) {
    %c0_i32 = arith.constant 0 : i32
    %c0_i32_0 = arith.constant 0 : i32
    %c0_i32_1 = arith.constant 0 : i32
    return %c0_i32, %c0_i32_0 : i32, i32
  }
  func.func @transform_5(%arg0: i32) -> (i32, i32) {
    %c0_i32 = arith.constant 0 : i32
    %c0_i32_0 = arith.constant 0 : i32
    return %arg0, %c0_i32 : i32, i32
  }
}

</mosaic_0001>

<llo_original>
// kernel: phone_type_writer_forward.1
$region0: #{phone_type_writer_forward.1}
  #allocation0 [shape = 'u32[]', space=smem, size = 0x4, offset = 0x4, fixed_abs, tag = 'smem constant byte address 0x4 - core index']
  #allocation1 [shape = 'u32[144,128]{1,0:T(1,128)}', space=vmem, size = 0x12000, scoped, tag = 'internal scratch']
  %s0 = inlined_call_operand.hbm [shape: f32[16,32], index: 0, kind: input, shape index: {}]
  %s1 = inlined_call_operand.hbm [shape: bf16[32,64], index: 1, kind: input, shape index: {}]
  %s2 = inlined_call_operand.vmem [shape: f32[1,64], index: 2, kind: input, shape index: {}]
  %s3 = inlined_call_operand.hbm [shape: f32[64,128], index: 3, kind: input, shape index: {}]
  %s4 = inlined_call_operand.vmem [shape: f32[1,128], index: 4, kind: input, shape index: {}]
  %s5 = inlined_call_operand.hbm [shape: bf16[16,128], index: 5, kind: output, shape index: {}]
  %s6 = sld [smem:[#allocation0]]
  $region42: #{phone_type_writer_forward.1} parent=0
    _
  %s8 = ssub.s32 1, %s6
  %s9 = scalar_select 0, %s8, %s6
  $region1: #{phone_type_writer_forward.1} parent=0
    #allocation2 [shape = 'u8[8192]{0}', space=vmem, size = 0x2000, scoped, tag = 'input window, operand 0, single buffered']
    #allocation3 [shape = 's32[1]{0}', space=sflag, size = 0x4, scoped, tag = 'scoped memory for phone_type_writer_forward.1']
    #allocation4 [shape = 's32[1]{0}', space=sflag, size = 0x4, scoped, tag = 'scoped memory for phone_type_writer_forward.1']
    #allocation5 [shape = 'u8[8192]{0}', space=vmem, size = 0x2000, scoped, tag = 'input window, operand 1, single buffered']
    #allocation6 [shape = 's32[1]{0}', space=sflag, size = 0x4, scoped, tag = 'scoped memory for phone_type_writer_forward.1']
    #allocation7 [shape = 'u8[32768]{0}', space=vmem, size = 0x8000, scoped, tag = 'input window, operand 3, single buffered']
    #allocation8 [shape = 'u8[4096]{0}', space=vmem, size = 0x1000, scoped, tag = 'output window, operand 0, single buffered']
    %10 = vsyncpa [#allocation3], 0
    %11 = vsyncpa [#allocation6], 0
    %12 = vsyncpa [#allocation4], 0
    // Predicated region
    $region2: #{phone_type_writer_forward.1} parent=1 // pred_check
      _
    $region3: #{phone_type_writer_forward.1} parent=1 // pred_check_branch
      %14 = sbr.rel (0) target = $region5
    $region4: #{phone_type_writer_forward.1} parent=1 // pred_region
      %s16 = ssub.s32 256, 256
      %17 = vsyncadd [#allocation3], %s16
      %s18 = sshll.u32 [#allocation2], 4
      %s19 = int_to_ptr.vmem [resolvable:$true] %s18
      %24 = dma.hbm_to_vmem [thread:$0]  %s0, 256, %s19, [#allocation3], 128, 128, 8
    $region5: #{phone_type_writer_forward.1} parent=1 // pred_fallthru
      _
    // Predicated region
    $region6: #{phone_type_writer_forward.1} parent=1 // pred_check
      _
    $region7: #{phone_type_writer_forward.1} parent=1 // pred_check_branch
      %26 = sbr.rel (0) target = $region9
    $region8: #{phone_type_writer_forward.1} parent=1 // pred_region
      %s28 = ssub.s32 256, 256
      %29 = vsyncadd [#allocation6], %s28
      %s30 = sshll.u32 [#allocation5], 4
      %s31 = int_to_ptr.vmem [resolvable:$true] %s30
      %36 = dma.hbm_to_vmem [thread:$0]  %s1, 256, %s31, [#allocation6], 64, 64, 4
    $region9: #{phone_type_writer_forward.1} parent=1 // pred_fallthru
      _
    // Predicated region
    $region10: #{phone_type_writer_forward.1} parent=1 // pred_check
      _
    $region11: #{phone_type_writer_forward.1} parent=1 // pred_check_branch
      %38 = sbr.rel (0) target = $region13
    $region12: #{phone_type_writer_forward.1} parent=1 // pred_region
      _
    $region13: #{phone_type_writer_forward.1} parent=1 // pred_fallthru
      _
    // Predicated region
    $region14: #{phone_type_writer_forward.1} parent=1 // pred_check
      _
    $region15: #{phone_type_writer_forward.1} parent=1 // pred_check_branch
      %40 = sbr.rel (0) target = $region17
    $region16: #{phone_type_writer_forward.1} parent=1 // pred_region
      %s42 = ssub.s32 1024, 1024
      %43 = vsyncadd [#allocation6], %s42
      %s44 = sshll.u32 [#allocation7], 4
      %s45 = int_to_ptr.vmem [resolvable:$true] %s44
      %50 = dma.hbm_to_vmem [thread:$0]  %s3, 1024, %s45, [#allocation6], 128, 128, 8
    $region17: #{phone_type_writer_forward.1} parent=1 // pred_fallthru
      _
    // Predicated region
    $region18: #{phone_type_writer_forward.1} parent=1 // pred_check
      _
    $region19: #{phone_type_writer_forward.1} parent=1 // pred_check_branch
      %52 = sbr.rel (0) target = $region21
    $region20: #{phone_type_writer_forward.1} parent=1 // pred_region
      _
    $region21: #{phone_type_writer_forward.1} parent=1 // pred_fallthru
      _
    // Predicated region
    $region22: #{phone_type_writer_forward.1} parent=1 // pred_check
      _
    $region23: #{phone_type_writer_forward.1} parent=1 // pred_check_branch
      %54 = sbr.rel (0) target = $region25
    $region24: #{phone_type_writer_forward.1} parent=1 // pred_region
      %55 = dma.done [#allocation3], 256
    $region25: #{phone_type_writer_forward.1} parent=1 // pred_fallthru
      _
    // Predicated region
    $region26: #{phone_type_writer_forward.1} parent=1 // pred_check
      _
    $region27: #{phone_type_writer_forward.1} parent=1 // pred_check_branch
      %57 = sbr.rel (0) target = $region29
    $region28: #{phone_type_writer_forward.1} parent=1 // pred_region
      %58 = dma.done [#allocation6], 256
    $region29: #{phone_type_writer_forward.1} parent=1 // pred_fallthru
      _
    // Predicated region
    $region30: #{phone_type_writer_forward.1} parent=1 // pred_check
      _
    $region31: #{phone_type_writer_forward.1} parent=1 // pred_check_branch
      %60 = sbr.rel (0) target = $region33
    $region32: #{phone_type_writer_forward.1} parent=1 // pred_region
      %61 = dma.done [#allocation6], 1024
    $region33: #{phone_type_writer_forward.1} parent=1 // pred_fallthru
      _
    %v63 = vld [vmem:[#allocation2] sm:$0xff]
    %v64 = vld [vmem:[#allocation2 + $0x8] sm:$0xff]
    %v65 = vpack.c.bf16 %v64, %v63
    %v66 = vld [vmem:[#allocation5] sm:$0xf]
    %v67 = vld [vmem:[#allocation5 + $0x4] sm:$0xf]
    %v68 = vld [vmem:[#allocation5 + $0x8] sm:$0xf]
    %v69 = vld [vmem:[#allocation5 + $0xc] sm:$0xf]
    %v70 = vld [vmem:[%s2] sm:$0x1]
    %v72 = vlaneseq
    %v73 = vshrl.u32 %v72, 7
    %v74 = vsub.s32 0, %v73
    %v75 = vrot.slane %v70, %v74
    %v81 = vunpack.c.l.b16 %v66
    %v82 = vunpack.c.l.b16 %v67
    %v83 = vunpack.c.l.b16 %v68
    %v84 = vunpack.c.l.b16 %v69
    %v85 = vpack.c.b16 %v82, %v81
    %v86 = vpack.c.b16 %v84, %v83
    %vm89 = vcmask 261120
    %v91 = vsel %vm89, %v65, 0
    %93 = vmatprep.subr.bf16.mxu0 0
    %94 = vmatpush1.bf16.msra.mxu0 %v85
    %95 = vmatprep.subr.bf16.mxu0 0
    %96 = vmatpush1.bf16.msra.mxu0 %v86
    %97 = vmatprep.subr.bf16.mxu0 0
    %98 = vmatpush1.bf16.msra.mxu0 0
    %99 = vmatprep.subr.bf16.mxu0 0
    %100 = vmatpush1.bf16.msra.mxu0 0
    %101 = vmatprep.subr.bf16.mxu0 0
    %102 = vmatpush1.bf16.msra.mxu0 0
    %103 = vmatprep.subr.bf16.mxu0 0
    %104 = vmatpush1.bf16.msra.mxu0 0
    %105 = vmatprep.subr.bf16.mxu0 0
    %106 = vmatpush1.bf16.msra.mxu0 0
    %107 = vmatprep.subr.bf16.mxu0 0
    %108 = vmatpush1.bf16.msra.mxu0 0
    %109 = vmatprep.subr.bf16.mxu0 0
    %110 = vmatpush1.bf16.msra.mxu0 0
    %111 = vmatprep.subr.bf16.mxu0 0
    %112 = vmatpush1.bf16.msra.mxu0 0
    %113 = vmatprep.subr.bf16.mxu0 0
    %114 = vmatpush1.bf16.msra.mxu0 0
    %115 = vmatprep.subr.bf16.mxu0 0
    %116 = vmatpush1.bf16.msra.mxu0 0
    %117 = vmatprep.subr.bf16.mxu0 0
    %118 = vmatpush1.bf16.msra.mxu0 0
    %119 = vmatprep.subr.bf16.mxu0 0
    %120 = vmatpush1.bf16.msra.mxu0 0
    %121 = vmatprep.subr.bf16.mxu0 0
    %122 = vmatpush1.bf16.msra.mxu0 0
    %123 = vmatprep.subr.bf16.mxu0 0
    %124 = vmatpush1.bf16.msra.mxu0 0
    %125 = vmatprep.mubr.bf16.mxu0 0
    %126 = vmatmul.mubr.bf16.gmra.mrb[0].mxu0 %v91
    %v127 = vpop.f32.mrb[0].mxu0
    %v128 = vadd.f32 %v75, %v127
    %v129 = vpop.f32.mrb[0].mxu0
    %v130 = vpop.f32.mrb[0].mxu0
    %v131 = vadd.f32 %v75, %v130
    %v132 = vpop.f32.mrb[0].mxu0
    %133 = vdwg.mxu0
    %v134 = vtanh.pop %v128
    %v135 = vtanh.pop %v131
    %v136 = vld [vmem:[#allocation7] sm:$0xff]
    %v137 = vld [vmem:[#allocation7 + $0x8] sm:$0xff]
    %v138 = vld [vmem:[#allocation7 + $0x10] sm:$0xff]
    %v139 = vld [vmem:[#allocation7 + $0x18] sm:$0xff]
    %v140 = vld [vmem:[#allocation7 + $0x20] sm:$0xff]
    %v141 = vld [vmem:[#allocation7 + $0x28] sm:$0xff]
    %v142 = vld [vmem:[#allocation7 + $0x30] sm:$0xff]
    %v143 = vld [vmem:[#allocation7 + $0x38] sm:$0xff]
    %v144 = vld [vmem:[%s4] sm:$0x1]
    %v146 = vlaneseq
    %v147 = vshrl.u32 %v146, 7
    %v148 = vsub.s32 0, %v147
    %v149 = vrot.slane %v144, %v148
    %vm151 = vcmask 523264
    %v153 = vsel %vm151, %v134, 0
    %v156 = vsel %vm151, %v135, 0
    %158 = vmatprep.subr.mxu0 0.0
    %159 = vmatpush1.msra.mxu0 %v136
    %160 = vmatprep.subr.mxu0 0.0
    %161 = vmatpush1.msra.mxu0 %v137
    %162 = vmatprep.subr.mxu0 0.0
    %163 = vmatpush1.msra.mxu0 %v138
    %164 = vmatprep.subr.mxu0 0.0
    %165 = vmatpush1.msra.mxu0 %v139
    %166 = vmatprep.subr.mxu0 0.0
    %167 = vmatpush1.msra.mxu0 %v140
    %168 = vmatprep.subr.mxu0 0.0
    %169 = vmatpush1.msra.mxu0 %v141
    %170 = vmatprep.subr.mxu0 0.0
    %171 = vmatpush1.msra.mxu0 %v142
    %172 = vmatprep.subr.mxu0 0.0
    %173 = vmatpush1.msra.mxu0 %v143
    %174 = vmatprep.subr.mxu0 0.0
    %175 = vmatpush1.msra.mxu0 0.0
    %176 = vmatprep.subr.mxu0 0.0
    %177 = vmatpush1.msra.mxu0 0.0
    %178 = vmatprep.subr.mxu0 0.0
    %179 = vmatpush1.msra.mxu0 0.0
    %180 = vmatprep.subr.mxu0 0.0
    %181 = vmatpush1.msra.mxu0 0.0
    %182 = vmatprep.subr.mxu0 0.0
    %183 = vmatpush1.msra.mxu0 0.0
    %184 = vmatprep.subr.mxu0 0.0
    %185 = vmatpush1.msra.mxu0 0.0
    %186 = vmatprep.subr.mxu0 0.0
    %187 = vmatpush1.msra.mxu0 0.0
    %188 = vmatprep.subr.mxu0 0.0
    %189 = vmatpush1.msra.mxu0 0.0
    %190 = vmatprep.subr.mxu0 0.0
    %191 = vmatpush1.msra.mxu0 0.0
    %192 = vmatprep.subr.mxu0 0.0
    %193 = vmatpush1.msra.mxu0 0.0
    %194 = vmatprep.subr.mxu0 0.0
    %195 = vmatpush1.msra.mxu0 0.0
    %196 = vmatprep.subr.mxu0 0.0
    %197 = vmatpush1.msra.mxu0 0.0
    %198 = vmatprep.subr.mxu0 0.0
    %199 = vmatpush1.msra.mxu0 0.0
    %200 = vmatprep.subr.mxu0 0.0
    %201 = vmatpush1.msra.mxu0 0.0
    %202 = vmatprep.subr.mxu0 0.0
    %203 = vmatpush1.msra.mxu0 0.0
    %204 = vmatprep.subr.mxu0 0.0
    %205 = vmatpush1.msra.mxu0 0.0
    %206 = vmatprep.subr.mxu0 0.0
    %207 = vmatpush1.msra.mxu0 0.0
    %208 = vmatprep.subr.mxu0 0.0
    %209 = vmatpush1.msra.mxu0 0.0
    %210 = vmatprep.subr.mxu0 0.0
    %211 = vmatpush1.msra.mxu0 0.0
    %212 = vmatprep.subr.mxu0 0.0
    %213 = vmatpush1.msra.mxu0 0.0
    %214 = vmatprep.subr.mxu0 0.0
    %215 = vmatpush1.msra.mxu0 0.0
    %216 = vmatprep.subr.mxu0 0.0
    %217 = vmatpush1.msra.mxu0 0.0
    %218 = vmatprep.subr.mxu0 0.0
    %219 = vmatpush1.msra.mxu0 0.0
    %220 = vmatprep.subr.mxu0 0.0
    %221 = vmatpush1.msra.mxu0 0.0
    %222 = vmatprep.mubr.f32.mxu0 0.0
    %223 = vmatmul.mubr.f32.gmra.mrb[0].mxu0 %v153
    %v224 = vpop.f32.mrb[0].mxu0
    %v225 = vadd.f32 %v149, %v224
    %v226 = vpop.f32.mrb[0].mxu0
    %227 = vmatprep.mubr.f32.mxu0 0.0
    %228 = vmatmul.mubr.f32.gmra.mrb[0].mxu0 %v156
    %v229 = vpop.f32.mrb[0].mxu0
    %v230 = vadd.f32 %v149, %v229
    %v231 = vpop.f32.mrb[0].mxu0
    %232 = vdwg.mxu0
    %233 = vmax.xlane.f32.xlu0 %v225
    %v234 = vpop.xlane.xlu0 %233
    %235 = vmax.xlane.f32.xlu0 %v230
    %v236 = vpop.xlane.xlu0 %235
    %v237 = vsub.f32 %v225, %v234
    %v238 = vsub.f32 %v230, %v236
    %v239 = vmul.f32 %v237, 1.442695
    %v240 = vpow.pop %v239
    %v241 = vmul.f32 %v238, 1.442695
    %v242 = vpow.pop %v241
    %243 = vadd.xlane.f32.xlu0 %v240
    %v244 = vpop.xlane.xlu0 %243
    %245 = vadd.xlane.f32.xlu0 %v242
    %v246 = vpop.xlane.xlu0 %245
    %v247 = vlog2.pop %v244
    %v248 = vmul.f32 %v247, 0.6931472
    %v249 = vlog2.pop %v246
    %v250 = vmul.f32 %v249, 0.6931472
    %v251 = vadd.f32 %v248, %v234
    %v252 = vadd.f32 %v250, %v236
    %v253 = vsub.f32 %v225, %v251
    %v254 = vsub.f32 %v230, %v252
    %v255 = vpack.c.bf16 %v254, %v253
    %v257 = vunpack.c.l.b16 %v255
    %v258 = vunpack.c.h.b16 %v255
    %v259 = vpack.c.b16 %v257, %v257
    %v260 = vpack.c.b16 %v258, %v258
    %263 = vst [vmem:[#allocation8] sm:$0xf] %v259
    %264 = vst [vmem:[#allocation8 + $0x4] sm:$0xf] %v260
    // Predicated region
    $region34: #{phone_type_writer_forward.1} parent=1 // pred_check
      _
    $region35: #{phone_type_writer_forward.1} parent=1 // pred_check_branch
      %266 = sbr.rel (0) target = $region37
    $region36: #{phone_type_writer_forward.1} parent=1 // pred_region
      %s268 = ssub.s32 128, 128
      %269 = vsyncadd [#allocation4], %s268
      %s270 = sshll.u32 [#allocation8], 4
      %s271 = int_to_ptr.vmem [resolvable:$true] %s270
      %276 = dma.vmem_to_hbm [thread:$0]  %s271, 128, %s5, [#allocation4], 64, 64, 4
    $region37: #{phone_type_writer_forward.1} parent=1 // pred_fallthru
      _
    // Predicated region
    $region38: #{phone_type_writer_forward.1} parent=1 // pred_check
      _
    $region39: #{phone_type_writer_forward.1} parent=1 // pred_check_branch
      %278 = sbr.rel (0) target = $region41
    $region40: #{phone_type_writer_forward.1} parent=1 // pred_region
      %279 = dma.done [#allocation4], 128
    $region41: #{phone_type_writer_forward.1} parent=1 // pred_fallthru
      _
    %280 = vsyncpa [#allocation3], 1
    %281 = vsyncpa [#allocation6], 1
    %282 = vsyncpa [#allocation4], 1

</llo_original>
